<compile_context>
chip_gen: v7x
topology: tpu7x:2x2x1
jax: 0.10.0
libtpu: 0.0.40
codegen_flags: <defaults>
</compile_context>

<pallas_src>
import jax
import jax.numpy as jnp
from jax.experimental import pallas as pl
from jax.experimental.pallas import tpu as pltpu


def _cross_attention_kernel(q_ref, k_ref, bias_ref,
                            wqT_ref, bq_ref, wkT_ref, bk_ref,
                            att_out_ref, energy_ref):
    bb, tq, h = q_ref.shape
    _, tk, _ = k_ref.shape

    # ---- projections: one (bb*T, H) x (H, H) matmul each (fills the MXU M-dim) ----
    q2 = q_ref[...].reshape(bb * tq, h)
    k2 = k_ref[...].reshape(bb * tk, h)
    frame2 = jnp.dot(q2, wqT_ref[...], preferred_element_type=jnp.float32) + bq_ref[...]
    phone2 = jnp.dot(k2, wkT_ref[...], preferred_element_type=jnp.float32) + bk_ref[...]
    frame = frame2.reshape(bb, tq, h)          # (bb, Tq, H)
    phone = phone2.reshape(bb, tk, h)          # (bb, Tk, H)

    # ---- energy = frame @ phone^T + mask bias (contraction on last dims, no transpose) ----
    energy = jnp.einsum("bqh,bkh->bqk", frame, phone,
                        preferred_element_type=jnp.float32)
    energy = energy + bias_ref[...][:, None, :]          # (bb, Tq, Tk)

    # ---- softmax over Tk ----
    e_max = jnp.max(energy, axis=-1, keepdims=True)
    e_exp = jnp.exp(energy - e_max)
    denom = jnp.sum(e_exp, axis=-1, keepdims=True)
    att = e_exp * pl.reciprocal(denom, approx=True)

    # ---- att_out = att @ k (raw k, as in the reference) ----
    att_out = jnp.einsum("bqk,bkh->bqh", att, k_ref[...],
                         preferred_element_type=jnp.float32)

    # Two slice stores instead of a lane-dim concatenate.
    att_out_ref[:, :, :h] = att_out.astype(att_out_ref.dtype)
    att_out_ref[:, :, h:] = frame.astype(att_out_ref.dtype)
    energy_ref[...] = energy.astype(energy_ref.dtype)


def _choose_block_b(batch, tq, tk, h, *, target_rows=256,
                    vmem_budget_bytes=12 * 1024 * 1024):
    """Largest batch chunk s.t. MXU M-dim ~ target_rows and blocks fit scoped VMEM."""
    bb = max(1, min(batch, max(1, target_rows // max(tq, 1))))

    def step_bytes(b):
        per_block = b * (tq * h + tk * h + tk + tq * 2 * h + tq * tk)
        weights = 2 * h * h + 2 * h
        return 4 * 2 * (per_block + weights)   # f32, double-buffered

    while bb > 1 and step_bytes(bb) > vmem_budget_bytes:
        bb -= 1
    return bb


def cross_attention(q, k, v, mask, wq, bq, wk, bk, *, block_b=None):
    """Pallas implementation of CrossAttention.forward.

    q: (B, Tq, H), k: (B, Tk, H), v: unused by the reference forward,
    mask: (B, Tk) float {0,1}. Returns (att_out (B, Tq, 2H), energy (B, Tq, Tk)).
    """
    del v  # unused by the reference forward()
    B, Tq, H = q.shape
    _, Tk, _ = k.shape

    if block_b is None:
        block_b = _choose_block_b(B, Tq, Tk, H)

    # Precompute once (constant per call): mask bias and pre-transposed weights.
    mask_bias = (1.0 - mask.astype(jnp.float32)) * -10000.0   # (B, Tk)
    wqT = wq.T
    wkT = wk.T
    bq2 = bq.reshape(1, H)
    bk2 = bk.reshape(1, H)

    # Pad batch to a multiple of block_b (padded rows are sliced off afterwards).
    Bp = pl.cdiv(B, block_b) * block_b
    if Bp != B:
        pad = Bp - B
        q = jnp.pad(q, ((0, pad), (0, 0), (0, 0)))
        k = jnp.pad(k, ((0, pad), (0, 0), (0, 0)))
        mask_bias = jnp.pad(mask_bias, ((0, pad), (0, 0)))

    grid = (Bp // block_b,)
    in_specs = [
        pl.BlockSpec((block_b, Tq, H), lambda b: (b, 0, 0)),   # q
        pl.BlockSpec((block_b, Tk, H), lambda b: (b, 0, 0)),   # k
        pl.BlockSpec((block_b, Tk), lambda b: (b, 0)),         # mask bias
        pl.BlockSpec((H, H), lambda b: (0, 0)),                # Wq^T
        pl.BlockSpec((1, H), lambda b: (0, 0)),                # bq
        pl.BlockSpec((H, H), lambda b: (0, 0)),                # Wk^T
        pl.BlockSpec((1, H), lambda b: (0, 0)),                # bk
    ]
    out_specs = [
        pl.BlockSpec((block_b, Tq, 2 * H), lambda b: (b, 0, 0)),   # att_out
        pl.BlockSpec((block_b, Tq, Tk), lambda b: (b, 0, 0)),      # energy
    ]
    out_shape = [
        jax.ShapeDtypeStruct((Bp, Tq, 2 * H), jnp.float32),
        jax.ShapeDtypeStruct((Bp, Tq, Tk), jnp.float32),
    ]

    cost = pl.CostEstimate(
        flops=2 * B * (Tq * H * H + Tk * H * H + 2 * Tq * Tk * H),
        transcendentals=B * Tq * Tk,
        bytes_accessed=4 * (B * Tq * H + B * Tk * H + B * Tk
                            + 2 * H * H + 2 * H
                            + B * Tq * 2 * H + B * Tq * Tk),
    )

    att_out, energy = pl.pallas_call(
        _cross_attention_kernel,
        grid_spec=pltpu.PrefetchScalarGridSpec(
            num_scalar_prefetch=0,
            grid=grid,
            in_specs=in_specs,
            out_specs=out_specs,
        ),
        out_shape=out_shape,
        compiler_params=pltpu.CompilerParams(
            dimension_semantics=("parallel",)),
        cost_estimate=cost,
    )(q, k, mask_bias, wqT, bq2, wkT, bk2)

    if Bp != B:
        att_out = att_out[:B]
        energy = energy[:B]
    return att_out, energy


def _reference(q, k, mask, wq, bq, wk, bk):
    frame = jnp.einsum("bth,oh->bto", q, wq) + bq
    phone = jnp.einsum("bth,oh->bto", k, wk) + bk
    energy = jnp.einsum("bqh,bkh->bqk", frame, phone)
    energy = energy + ((1.0 - mask) * -10000.0)[:, None, :]
    att = jax.nn.softmax(energy, axis=-1)
    att_out = jnp.einsum("bqk,bkh->bqh", att, k)
    return jnp.concatenate([att_out, frame], axis=-1), energy


if __name__ == "__main__":
    B, Tq, Tk, H = 2, 8, 8, 32

    key = jax.random.PRNGKey(0)
    kq, kk, kv, kwq, kbq, kwk, kbk, kmask = jax.random.split(key, 8)

    q = jax.random.normal(kq, (B, Tq, H), dtype=jnp.float32)
    k = jax.random.normal(kk, (B, Tk, H), dtype=jnp.float32)
    v = jax.random.normal(kv, (B, Tk, H), dtype=jnp.float32)  # unused in forward
    # binary mask (1 = keep, 0 = masked); keep at least the first position
    mask = (jax.random.uniform(kmask, (B, Tk)) > 0.3).astype(jnp.float32)
    mask = mask.at[:, 0].set(1.0)

    # Deterministic Linear params (PyTorch nn.Linear stores weight as (out, in)).
    bound = 1.0 / (H ** 0.5)
    wq = jax.random.uniform(kwq, (H, H), minval=-bound, maxval=bound, dtype=jnp.float32)
    bq = jax.random.uniform(kbq, (H,), minval=-bound, maxval=bound, dtype=jnp.float32)
    wk = jax.random.uniform(kwk, (H, H), minval=-bound, maxval=bound, dtype=jnp.float32)
    bk = jax.random.uniform(kbk, (H,), minval=-bound, maxval=bound, dtype=jnp.float32)

    # LayerNorm params exist in __init__ but are unused by forward(); create for fidelity.
    ln_gamma = jnp.ones((H,), dtype=jnp.float32)
    ln_beta = jnp.zeros((H,), dtype=jnp.float32)

    att_out, energy = cross_attention(q, k, v, mask, wq, bq, wk, bk)
    jax.block_until_ready(att_out)
    jax.block_until_ready(energy)

    ref_att_out, ref_energy = _reference(q, k, mask, wq, bq, wk, bk)
    # att_out tolerance is slightly looser because the softmax denominator uses the
    # EUP approximate reciprocal (approx=True) rather than an exact divide.
    assert jnp.allclose(att_out, ref_att_out, atol=5e-3, rtol=5e-3), "att_out mismatch"
    assert jnp.allclose(energy, ref_energy, atol=1e-3, rtol=1e-4), "energy mismatch"

    print("KERNEL_OK")
</pallas_src>

<mosaic_0001>
module attributes {stable_mosaic.version = 11 : i64} {
  func.func @_cross_attention_kernel(%arg0: i32, %arg1: memref<2x8x32xf32, #tpu.memory_space<vmem>>, %arg2: memref<2x8x32xf32, #tpu.memory_space<vmem>>, %arg3: memref<2x8xf32, #tpu.memory_space<vmem>>, %arg4: memref<32x32xf32, #tpu.memory_space<vmem>>, %arg5: memref<1x32xf32, #tpu.memory_space<vmem>>, %arg6: memref<32x32xf32, #tpu.memory_space<vmem>>, %arg7: memref<1x32xf32, #tpu.memory_space<vmem>>, %arg8: memref<2x8x64xf32, #tpu.memory_space<vmem>>, %arg9: memref<2x8x8xf32, #tpu.memory_space<vmem>>) attributes {dimension_semantics = [#tpu.dimension_semantics<parallel>], iteration_bounds = array<i64: 1>, scalar_prefetch = 0 : i64, scratch_operands = 0 : i64, tpu.core_type = #tpu.core_type<tc>, window_params = [{transform_indices = @transform_0, window_bounds = array<i64: 2, 8, 32>}, {transform_indices = @transform_1, window_bounds = array<i64: 2, 8, 32>}, {transform_indices = @transform_2, window_bounds = array<i64: 2, 8>}, {pipeline_mode = #tpu.pipeline_mode<synchronous>, transform_indices = @transform_3, window_bounds = array<i64: 32, 32>}, {pipeline_mode = #tpu.pipeline_mode<synchronous>, transform_indices = @transform_4, window_bounds = array<i64: 1, 32>}, {pipeline_mode = #tpu.pipeline_mode<synchronous>, transform_indices = @transform_5, window_bounds = array<i64: 32, 32>}, {pipeline_mode = #tpu.pipeline_mode<synchronous>, transform_indices = @transform_6, window_bounds = array<i64: 1, 32>}, {transform_indices = @transform_7, window_bounds = array<i64: 2, 8, 64>}, {transform_indices = @transform_8, window_bounds = array<i64: 2, 8, 8>}]} {
    %c0 = arith.constant 0 : index
    %c0_0 = arith.constant 0 : index
    %c0_1 = arith.constant 0 : index
    %0 = vector.load %arg1[%c0, %c0_0, %c0_1] : memref<2x8x32xf32, #tpu.memory_space<vmem>>, vector<2x8x32xf32>
    %1 = vector.shape_cast %0 : vector<2x8x32xf32> to vector<16x32xf32>
    %c0_2 = arith.constant 0 : index
    %c0_3 = arith.constant 0 : index
    %c0_4 = arith.constant 0 : index
    %2 = vector.load %arg2[%c0_2, %c0_3, %c0_4] : memref<2x8x32xf32, #tpu.memory_space<vmem>>, vector<2x8x32xf32>
    %3 = vector.shape_cast %2 : vector<2x8x32xf32> to vector<16x32xf32>
    %c0_5 = arith.constant 0 : index
    %c0_6 = arith.constant 0 : index
    %4 = vector.load %arg4[%c0_5, %c0_6] : memref<32x32xf32, #tpu.memory_space<vmem>>, vector<32x32xf32>
    %cst = arith.constant dense<0.000000e+00> : vector<16x32xf32>
    %5 = tpu.matmul %1, %4, %cst {dimension_numbers = #tpu.dot_dimension_numbers<[1], [0], [0], [1], [0, 0, 1, 1], [], []>} : vector<16x32xf32>, vector<32x32xf32>, vector<16x32xf32> -> vector<16x32xf32>
    %c0_7 = arith.constant 0 : index
    %c0_8 = arith.constant 0 : index
    %6 = vector.load %arg5[%c0_7, %c0_8] : memref<1x32xf32, #tpu.memory_space<vmem>>, vector<1x32xf32>
    %7 = vector.broadcast %6 : vector<1x32xf32> to vector<16x32xf32>
    %8 = arith.addf %5, %7 : vector<16x32xf32>
    %c0_9 = arith.constant 0 : index
    %c0_10 = arith.constant 0 : index
    %9 = vector.load %arg6[%c0_9, %c0_10] : memref<32x32xf32, #tpu.memory_space<vmem>>, vector<32x32xf32>
    %cst_11 = arith.constant dense<0.000000e+00> : vector<16x32xf32>
    %10 = tpu.matmul %3, %9, %cst_11 {dimension_numbers = #tpu.dot_dimension_numbers<[1], [0], [0], [1], [0, 0, 1, 1], [], []>} : vector<16x32xf32>, vector<32x32xf32>, vector<16x32xf32> -> vector<16x32xf32>
    %c0_12 = arith.constant 0 : index
    %c0_13 = arith.constant 0 : index
    %11 = vector.load %arg7[%c0_12, %c0_13] : memref<1x32xf32, #tpu.memory_space<vmem>>, vector<1x32xf32>
    %12 = vector.broadcast %11 : vector<1x32xf32> to vector<16x32xf32>
    %13 = arith.addf %10, %12 : vector<16x32xf32>
    %14 = vector.shape_cast %8 : vector<16x32xf32> to vector<2x8x32xf32>
    %15 = vector.shape_cast %13 : vector<16x32xf32> to vector<2x8x32xf32>
    "tpu.trace_start"() <{level = 10 : i32, message = "bqh,bkh->bqk"}> : () -> ()
    %cst_14 = arith.constant dense<0.000000e+00> : vector<2x8x8xf32>
    %16 = tpu.matmul %14, %15, %cst_14 {dimension_numbers = #tpu.dot_dimension_numbers<[2], [2], [1], [1], [0, 0, 0, 1, 1, 1], [0], [0]>} : vector<2x8x32xf32>, vector<2x8x32xf32>, vector<2x8x8xf32> -> vector<2x8x8xf32>
    "tpu.trace_stop"() : () -> ()
    %c0_15 = arith.constant 0 : index
    %c0_16 = arith.constant 0 : index
    %17 = vector.load %arg3[%c0_15, %c0_16] : memref<2x8xf32, #tpu.memory_space<vmem>>, vector<2x8xf32>
    %18 = vector.shape_cast %17 : vector<2x8xf32> to vector<2x1x8xf32>
    %19 = vector.broadcast %18 : vector<2x1x8xf32> to vector<2x8x8xf32>
    %20 = arith.addf %16, %19 : vector<2x8x8xf32>
    %cst_17 = arith.constant dense<0xFF800000> : vector<2x8xf32>
    %21 = vector.multi_reduction <maximumf>, %20, %cst_17 [2] : vector<2x8x8xf32> to vector<2x8xf32>
    %22 = vector.shape_cast %21 : vector<2x8xf32> to vector<2x8x1xf32>
    %23 = vector.broadcast %22 : vector<2x8x1xf32> to vector<2x8x8xf32>
    %24 = arith.subf %20, %23 : vector<2x8x8xf32>
    %25 = math.exp %24 : vector<2x8x8xf32>
    %cst_18 = arith.constant dense<0.000000e+00> : vector<2x8xf32>
    %26 = vector.multi_reduction <add>, %25, %cst_18 [2] : vector<2x8x8xf32> to vector<2x8xf32>
    %27 = vector.shape_cast %26 : vector<2x8xf32> to vector<2x8x1xf32>
    %28 = tpu.reciprocal %27 {approx = true} : vector<2x8x1xf32> -> vector<2x8x1xf32>
    %29 = vector.broadcast %28 : vector<2x8x1xf32> to vector<2x8x8xf32>
    %30 = arith.mulf %25, %29 : vector<2x8x8xf32>
    %c0_19 = arith.constant 0 : index
    %c0_20 = arith.constant 0 : index
    %c0_21 = arith.constant 0 : index
    %31 = vector.load %arg2[%c0_19, %c0_20, %c0_21] : memref<2x8x32xf32, #tpu.memory_space<vmem>>, vector<2x8x32xf32>
    "tpu.trace_start"() <{level = 10 : i32, message = "bqk,bkh->bqh"}> : () -> ()
    %cst_22 = arith.constant dense<0.000000e+00> : vector<2x8x32xf32>
    %32 = tpu.matmul %30, %31, %cst_22 {dimension_numbers = #tpu.dot_dimension_numbers<[2], [1], [1], [2], [0, 0, 0, 1, 1, 2], [0], [0]>} : vector<2x8x8xf32>, vector<2x8x32xf32>, vector<2x8x32xf32> -> vector<2x8x32xf32>
    "tpu.trace_stop"() : () -> ()
    %c0_23 = arith.constant 0 : index
    %c0_24 = arith.constant 0 : index
    %c0_25 = arith.constant 0 : index
    %33 = vector.load %arg8[%c0_23, %c0_24, %c0_25] : memref<2x8x64xf32, #tpu.memory_space<vmem>>, vector<2x8x32xf32>
    tpu.vector_store %arg8[%c0_23, %c0_24, %c0_25], %32 {strides = array<i32>} : memref<2x8x64xf32, #tpu.memory_space<vmem>>, vector<2x8x32xf32>,
    %c0_26 = arith.constant 0 : index
    %c0_27 = arith.constant 0 : index
    %c32 = arith.constant 32 : index
    %34 = vector.load %arg8[%c0_26, %c0_27, %c32] : memref<2x8x64xf32, #tpu.memory_space<vmem>>, vector<2x8x32xf32>
    tpu.vector_store %arg8[%c0_26, %c0_27, %c32], %14 {strides = array<i32>} : memref<2x8x64xf32, #tpu.memory_space<vmem>>, vector<2x8x32xf32>,
    %c0_28 = arith.constant 0 : index
    %c0_29 = arith.constant 0 : index
    %c0_30 = arith.constant 0 : index
    %35 = vector.load %arg9[%c0_28, %c0_29, %c0_30] : memref<2x8x8xf32, #tpu.memory_space<vmem>>, vector<2x8x8xf32>
    tpu.vector_store %arg9[%c0_28, %c0_29, %c0_30], %20 {strides = array<i32>} : memref<2x8x8xf32, #tpu.memory_space<vmem>>, vector<2x8x8xf32>,
    return
  }
  func.func @transform_0(%arg0: i32) -> (i32, i32, i32) {
    %c0_i32 = arith.constant 0 : i32
    %c0_i32_0 = arith.constant 0 : i32
    %c0_i32_1 = arith.constant 0 : i32
    return %arg0, %c0_i32, %c0_i32_0 : i32, i32, i32
  }
  func.func @transform_1(%arg0: i32) -> (i32, i32, i32) {
    %c0_i32 = arith.constant 0 : i32
    %c0_i32_0 = arith.constant 0 : i32
    %c0_i32_1 = arith.constant 0 : i32
    return %arg0, %c0_i32, %c0_i32_0 : i32, i32, i32
  }
  func.func @transform_2(%arg0: i32) -> (i32, i32) {
    %c0_i32 = arith.constant 0 : i32
    %c0_i32_0 = arith.constant 0 : i32
    return %arg0, %c0_i32 : i32, i32
  }
  func.func @transform_3(%arg0: i32) -> (i32, i32) {
    %c0_i32 = arith.constant 0 : i32
    %c0_i32_0 = arith.constant 0 : i32
    %c0_i32_1 = arith.constant 0 : i32
    return %c0_i32, %c0_i32_0 : i32, i32
  }
  func.func @transform_4(%arg0: i32) -> (i32, i32) {
    %c0_i32 = arith.constant 0 : i32
    %c0_i32_0 = arith.constant 0 : i32
    %c0_i32_1 = arith.constant 0 : i32
    return %c0_i32, %c0_i32_0 : i32, i32
  }
  func.func @transform_5(%arg0: i32) -> (i32, i32) {
    %c0_i32 = arith.constant 0 : i32
    %c0_i32_0 = arith.constant 0 : i32
    %c0_i32_1 = arith.constant 0 : i32
    return %c0_i32, %c0_i32_0 : i32, i32
  }
  func.func @transform_6(%arg0: i32) -> (i32, i32) {
    %c0_i32 = arith.constant 0 : i32
    %c0_i32_0 = arith.constant 0 : i32
    %c0_i32_1 = arith.constant 0 : i32
    return %c0_i32, %c0_i32_0 : i32, i32
  }
  func.func @transform_7(%arg0: i32) -> (i32, i32, i32) {
    %c0_i32 = arith.constant 0 : i32
    %c0_i32_0 = arith.constant 0 : i32
    %c0_i32_1 = arith.constant 0 : i32
    return %arg0, %c0_i32, %c0_i32_0 : i32, i32, i32
  }
  func.func @transform_8(%arg0: i32) -> (i32, i32, i32) {
    %c0_i32 = arith.constant 0 : i32
    %c0_i32_0 = arith.constant 0 : i32
    %c0_i32_1 = arith.constant 0 : i32
    return %arg0, %c0_i32, %c0_i32_0 : i32, i32, i32
  }
}

</mosaic_0001>

<llo_original>
// kernel: tpu_custom_call.1
$region0: #{tpu_custom_call.1}
  #allocation0 [shape = 'u32[]', space=smem, size = 0x4, offset = 0x4, fixed_abs, tag = 'smem constant byte address 0x4 - core index']
  #allocation1 [shape = 'u32[144,128]{1,0:T(1,128)}', space=vmem, size = 0x12000, scoped, tag = 'internal scratch']
  %s0 = inlined_call_operand.hbm [shape: f32[2,8,32], index: 0, kind: input, shape index: {}]
  %s1 = inlined_call_operand.hbm [shape: f32[2,8,32], index: 1, kind: input, shape index: {}]
  %s2 = inlined_call_operand.vmem [shape: f32[2,8], index: 2, kind: input, shape index: {}]
  %s3 = inlined_call_operand.hbm [shape: f32[32,32], index: 3, kind: input, shape index: {}]
  %s4 = inlined_call_operand.vmem [shape: f32[1,32], index: 4, kind: input, shape index: {}]
  %s5 = inlined_call_operand.hbm [shape: f32[32,32], index: 5, kind: input, shape index: {}]
  %s6 = inlined_call_operand.vmem [shape: f32[1,32], index: 6, kind: input, shape index: {}]
  %s7 = inlined_call_operand.hbm [shape: f32[2,8,64], index: 7, kind: output, shape index: {0}]
  %s8 = inlined_call_operand.hbm [shape: f32[2,8,8], index: 8, kind: output, shape index: {1}]
  %9 = xla_tuple %s7, %s8
  %s10 = sld [smem:[#allocation0]]
  $region62: #{tpu_custom_call.1} parent=0
    _
  %s12 = ssub.s32 1, %s10
  %s13 = scalar_select 0, %s12, %s10
  $region1: #{tpu_custom_call.1} parent=0
    #allocation2 [shape = 'u8[8192]{0}', space=vmem, size = 0x2000, scoped, tag = 'input window, operand 0, single buffered']
    #allocation3 [shape = 's32[1]{0}', space=sflag, size = 0x4, scoped, tag = 'scoped memory for tpu_custom_call.1']
    #allocation4 [shape = 's32[1]{0}', space=sflag, size = 0x4, scoped, tag = 'scoped memory for tpu_custom_call.1']
    #allocation5 [shape = 'u8[8192]{0}', space=vmem, size = 0x2000, scoped, tag = 'input window, operand 1, single buffered']
    #allocation6 [shape = 's32[1]{0}', space=sflag, size = 0x4, scoped, tag = 'scoped memory for tpu_custom_call.1']
    #allocation7 [shape = 'u8[16384]{0}', space=vmem, size = 0x4000, scoped, tag = 'input window, operand 3, single buffered']
    #allocation8 [shape = 'u8[16384]{0}', space=vmem, size = 0x4000, scoped, tag = 'input window, operand 5, single buffered']
    #allocation9 [shape = 's32[1]{0}', space=sflag, size = 0x4, scoped, tag = 'scoped memory for tpu_custom_call.1']
    #allocation10 [shape = 'u8[8192]{0}', space=vmem, size = 0x2000, scoped, tag = 'output window, operand 0, single buffered']
    #allocation11 [shape = 'u8[8192]{0}', space=vmem, size = 0x2000, scoped, tag = 'output window, operand 1, single buffered']
    #allocation12 [shape = 's32[1]{0}', space=sflag, size = 0x4, scoped, tag = 'scoped memory for tpu_custom_call.1']
    %14 = vsyncpa [#allocation3], 0
    %15 = vsyncpa [#allocation6], 0
    %16 = vsyncpa [#allocation9], 0
    %17 = vsyncpa [#allocation4], 0
    %18 = vsyncpa [#allocation12], 0
    // Predicated region
    $region2: #{tpu_custom_call.1} parent=1 // pred_check
      _
    $region3: #{tpu_custom_call.1} parent=1 // pred_check_branch
      %20 = sbr.rel (0) target = $region5
    $region4: #{tpu_custom_call.1} parent=1 // pred_region
      %s22 = ssub.s32 256, 256
      %23 = vsyncadd [#allocation3], %s22
      %s24 = sshll.u32 [#allocation2], 4
      %s25 = int_to_ptr.vmem [resolvable:$true] %s24
      %30 = dma.hbm_to_vmem [thread:$0]  %s0, 256, %s25, [#allocation3], 128, 128, 8
    $region5: #{tpu_custom_call.1} parent=1 // pred_fallthru
      _
    // Predicated region
    $region6: #{tpu_custom_call.1} parent=1 // pred_check
      _
    $region7: #{tpu_custom_call.1} parent=1 // pred_check_branch
      %32 = sbr.rel (0) target = $region9
    $region8: #{tpu_custom_call.1} parent=1 // pred_region
      %s34 = ssub.s32 256, 256
      %35 = vsyncadd [#allocation6], %s34
      %s36 = sshll.u32 [#allocation5], 4
      %s37 = int_to_ptr.vmem [resolvable:$true] %s36
      %42 = dma.hbm_to_vmem [thread:$0]  %s1, 256, %s37, [#allocation6], 128, 128, 8
    $region9: #{tpu_custom_call.1} parent=1 // pred_fallthru
      _
    // Predicated region
    $region10: #{tpu_custom_call.1} parent=1 // pred_check
      _
    $region11: #{tpu_custom_call.1} parent=1 // pred_check_branch
      %44 = sbr.rel (0) target = $region13
    $region12: #{tpu_custom_call.1} parent=1 // pred_region
      _
    $region13: #{tpu_custom_call.1} parent=1 // pred_fallthru
      _
    // Predicated region
    $region14: #{tpu_custom_call.1} parent=1 // pred_check
      _
    $region15: #{tpu_custom_call.1} parent=1 // pred_check_branch
      %46 = sbr.rel (0) target = $region17
    $region16: #{tpu_custom_call.1} parent=1 // pred_region
      %s48 = ssub.s32 512, 512
      %49 = vsyncadd [#allocation6], %s48
      %s50 = sshll.u32 [#allocation7], 4
      %s51 = int_to_ptr.vmem [resolvable:$true] %s50
      %56 = dma.hbm_to_vmem [thread:$0]  %s3, 512, %s51, [#allocation6], 128, 128, 8
    $region17: #{tpu_custom_call.1} parent=1 // pred_fallthru
      _
    // Predicated region
    $region18: #{tpu_custom_call.1} parent=1 // pred_check
      _
    $region19: #{tpu_custom_call.1} parent=1 // pred_check_branch
      %58 = sbr.rel (0) target = $region21
    $region20: #{tpu_custom_call.1} parent=1 // pred_region
      _
    $region21: #{tpu_custom_call.1} parent=1 // pred_fallthru
      _
    // Predicated region
    $region22: #{tpu_custom_call.1} parent=1 // pred_check
      _
    $region23: #{tpu_custom_call.1} parent=1 // pred_check_branch
      %60 = sbr.rel (0) target = $region25
    $region24: #{tpu_custom_call.1} parent=1 // pred_region
      %s62 = ssub.s32 512, 512
      %63 = vsyncadd [#allocation9], %s62
      %s64 = sshll.u32 [#allocation8], 4
      %s65 = int_to_ptr.vmem [resolvable:$true] %s64
      %70 = dma.hbm_to_vmem [thread:$0]  %s5, 512, %s65, [#allocation9], 128, 128, 8
    $region25: #{tpu_custom_call.1} parent=1 // pred_fallthru
      _
    // Predicated region
    $region26: #{tpu_custom_call.1} parent=1 // pred_check
      _
    $region27: #{tpu_custom_call.1} parent=1 // pred_check_branch
      %72 = sbr.rel (0) target = $region29
    $region28: #{tpu_custom_call.1} parent=1 // pred_region
      _
    $region29: #{tpu_custom_call.1} parent=1 // pred_fallthru
      _
    // Predicated region
    $region30: #{tpu_custom_call.1} parent=1 // pred_check
      _
    $region31: #{tpu_custom_call.1} parent=1 // pred_check_branch
      %74 = sbr.rel (0) target = $region33
    $region32: #{tpu_custom_call.1} parent=1 // pred_region
      %75 = dma.done [#allocation3], 256
    $region33: #{tpu_custom_call.1} parent=1 // pred_fallthru
      _
    // Predicated region
    $region34: #{tpu_custom_call.1} parent=1 // pred_check
      _
    $region35: #{tpu_custom_call.1} parent=1 // pred_check_branch
      %77 = sbr.rel (0) target = $region37
    $region36: #{tpu_custom_call.1} parent=1 // pred_region
      %78 = dma.done [#allocation6], 256
    $region37: #{tpu_custom_call.1} parent=1 // pred_fallthru
      _
    // Predicated region
    $region38: #{tpu_custom_call.1} parent=1 // pred_check
      _
    $region39: #{tpu_custom_call.1} parent=1 // pred_check_branch
      %80 = sbr.rel (0) target = $region41
    $region40: #{tpu_custom_call.1} parent=1 // pred_region
      %81 = dma.done [#allocation6], 512
    $region41: #{tpu_custom_call.1} parent=1 // pred_fallthru
      _
    // Predicated region
    $region42: #{tpu_custom_call.1} parent=1 // pred_check
      _
    $region43: #{tpu_custom_call.1} parent=1 // pred_check_branch
      %83 = sbr.rel (0) target = $region45
    $region44: #{tpu_custom_call.1} parent=1 // pred_region
      %84 = dma.done [#allocation9], 512
    $region45: #{tpu_custom_call.1} parent=1 // pred_fallthru
      _
    %v85 = vld [vmem:[#allocation2] sm:$0xff]
    %v86 = vld [vmem:[#allocation2 + $0x8] sm:$0xff]
    %v87 = vld [vmem:[#allocation5] sm:$0xff]
    %v88 = vld [vmem:[#allocation5 + $0x8] sm:$0xff]
    %v89 = vld [vmem:[#allocation7] sm:$0xff]
    %v90 = vld [vmem:[#allocation7 + $0x8] sm:$0xff]
    %v91 = vld [vmem:[#allocation7 + $0x10] sm:$0xff]
    %v92 = vld [vmem:[#allocation7 + $0x18] sm:$0xff]
    %v93 = vld [vmem:[%s4] sm:$0x1]
    %v95 = vlaneseq
    %v96 = vshrl.u32 %v95, 7
    %v97 = vsub.s32 0, %v96
    %v98 = vrot.slane %v93, %v97
    %vm100 = vcmask 261120
    %v102 = vsel %vm100, %v85, 0
    %v105 = vsel %vm100, %v86, 0
    %107 = vmatprep.subr.mxu0 0.0
    %108 = vmatpush1.msra.mxu0 %v89
    %109 = vmatprep.subr.mxu0 0.0
    %110 = vmatpush1.msra.mxu0 %v90
    %111 = vmatprep.subr.mxu0 0.0
    %112 = vmatpush1.msra.mxu0 %v91
    %113 = vmatprep.subr.mxu0 0.0
    %114 = vmatpush1.msra.mxu0 %v92
    %115 = vmatprep.subr.mxu0 0.0
    %116 = vmatpush1.msra.mxu0 0.0
    %117 = vmatprep.subr.mxu0 0.0
    %118 = vmatpush1.msra.mxu0 0.0
    %119 = vmatprep.subr.mxu0 0.0
    %120 = vmatpush1.msra.mxu0 0.0
    %121 = vmatprep.subr.mxu0 0.0
    %122 = vmatpush1.msra.mxu0 0.0
    %123 = vmatprep.subr.mxu0 0.0
    %124 = vmatpush1.msra.mxu0 0.0
    %125 = vmatprep.subr.mxu0 0.0
    %126 = vmatpush1.msra.mxu0 0.0
    %127 = vmatprep.subr.mxu0 0.0
    %128 = vmatpush1.msra.mxu0 0.0
    %129 = vmatprep.subr.mxu0 0.0
    %130 = vmatpush1.msra.mxu0 0.0
    %131 = vmatprep.subr.mxu0 0.0
    %132 = vmatpush1.msra.mxu0 0.0
    %133 = vmatprep.subr.mxu0 0.0
    %134 = vmatpush1.msra.mxu0 0.0
    %135 = vmatprep.subr.mxu0 0.0
    %136 = vmatpush1.msra.mxu0 0.0
    %137 = vmatprep.subr.mxu0 0.0
    %138 = vmatpush1.msra.mxu0 0.0
    %139 = vmatprep.subr.mxu0 0.0
    %140 = vmatpush1.msra.mxu0 0.0
    %141 = vmatprep.subr.mxu0 0.0
    %142 = vmatpush1.msra.mxu0 0.0
    %143 = vmatprep.subr.mxu0 0.0
    %144 = vmatpush1.msra.mxu0 0.0
    %145 = vmatprep.subr.mxu0 0.0
    %146 = vmatpush1.msra.mxu0 0.0
    %147 = vmatprep.subr.mxu0 0.0
    %148 = vmatpush1.msra.mxu0 0.0
    %149 = vmatprep.subr.mxu0 0.0
    %150 = vmatpush1.msra.mxu0 0.0
    %151 = vmatprep.subr.mxu0 0.0
    %152 = vmatpush1.msra.mxu0 0.0
    %153 = vmatprep.subr.mxu0 0.0
    %154 = vmatpush1.msra.mxu0 0.0
    %155 = vmatprep.subr.mxu0 0.0
    %156 = vmatpush1.msra.mxu0 0.0
    %157 = vmatprep.subr.mxu0 0.0
    %158 = vmatpush1.msra.mxu0 0.0
    %159 = vmatprep.subr.mxu0 0.0
    %160 = vmatpush1.msra.mxu0 0.0
    %161 = vmatprep.subr.mxu0 0.0
    %162 = vmatpush1.msra.mxu0 0.0
    %163 = vmatprep.subr.mxu0 0.0
    %164 = vmatpush1.msra.mxu0 0.0
    %165 = vmatprep.subr.mxu0 0.0
    %166 = vmatpush1.msra.mxu0 0.0
    %167 = vmatprep.subr.mxu0 0.0
    %168 = vmatpush1.msra.mxu0 0.0
    %169 = vmatprep.subr.mxu0 0.0
    %170 = vmatpush1.msra.mxu0 0.0
    %171 = vmatprep.mubr.f32.mxu0 0.0
    %172 = vmatmul.mubr.f32.gmra.mrb[0].mxu0 %v102
    %v173 = vpop.f32.mrb[0].mxu0
    %v174 = vadd.f32 %v98, %v173
    %v175 = vpop.f32.mrb[0].mxu0
    %176 = vmatprep.mubr.f32.mxu0 0.0
    %177 = vmatmul.mubr.f32.gmra.mrb[0].mxu0 %v105
    %v178 = vpop.f32.mrb[0].mxu0
    %v179 = vadd.f32 %v98, %v178
    %v180 = vpop.f32.mrb[0].mxu0
    %181 = vdwg.mxu0
    %v182 = vld [vmem:[#allocation8] sm:$0xff]
    %v183 = vld [vmem:[#allocation8 + $0x8] sm:$0xff]
    %v184 = vld [vmem:[#allocation8 + $0x10] sm:$0xff]
    %v185 = vld [vmem:[#allocation8 + $0x18] sm:$0xff]
    %v186 = vld [vmem:[%s6] sm:$0x1]
    %v188 = vlaneseq
    %v189 = vshrl.u32 %v188, 7
    %v190 = vsub.s32 0, %v189
    %v191 = vrot.slane %v186, %v190
    %v194 = vsel %vm100, %v87, 0
    %v197 = vsel %vm100, %v88, 0
    %199 = vmatprep.subr.mxu0 0.0
    %200 = vmatpush1.msra.mxu0 %v182
    %201 = vmatprep.subr.mxu0 0.0
    %202 = vmatpush1.msra.mxu0 %v183
    %203 = vmatprep.subr.mxu0 0.0
    %204 = vmatpush1.msra.mxu0 %v184
    %205 = vmatprep.subr.mxu0 0.0
    %206 = vmatpush1.msra.mxu0 %v185
    %207 = vmatprep.subr.mxu0 0.0
    %208 = vmatpush1.msra.mxu0 0.0
    %209 = vmatprep.subr.mxu0 0.0
    %210 = vmatpush1.msra.mxu0 0.0
    %211 = vmatprep.subr.mxu0 0.0
    %212 = vmatpush1.msra.mxu0 0.0
    %213 = vmatprep.subr.mxu0 0.0
    %214 = vmatpush1.msra.mxu0 0.0
    %215 = vmatprep.subr.mxu0 0.0
    %216 = vmatpush1.msra.mxu0 0.0
    %217 = vmatprep.subr.mxu0 0.0
    %218 = vmatpush1.msra.mxu0 0.0
    %219 = vmatprep.subr.mxu0 0.0
    %220 = vmatpush1.msra.mxu0 0.0
    %221 = vmatprep.subr.mxu0 0.0
    %222 = vmatpush1.msra.mxu0 0.0
    %223 = vmatprep.subr.mxu0 0.0
    %224 = vmatpush1.msra.mxu0 0.0
    %225 = vmatprep.subr.mxu0 0.0
    %226 = vmatpush1.msra.mxu0 0.0
    %227 = vmatprep.subr.mxu0 0.0
    %228 = vmatpush1.msra.mxu0 0.0
    %229 = vmatprep.subr.mxu0 0.0
    %230 = vmatpush1.msra.mxu0 0.0
    %231 = vmatprep.subr.mxu0 0.0
    %232 = vmatpush1.msra.mxu0 0.0
    %233 = vmatprep.subr.mxu0 0.0
    %234 = vmatpush1.msra.mxu0 0.0
    %235 = vmatprep.subr.mxu0 0.0
    %236 = vmatpush1.msra.mxu0 0.0
    %237 = vmatprep.subr.mxu0 0.0
    %238 = vmatpush1.msra.mxu0 0.0
    %239 = vmatprep.subr.mxu0 0.0
    %240 = vmatpush1.msra.mxu0 0.0
    %241 = vmatprep.subr.mxu0 0.0
    %242 = vmatpush1.msra.mxu0 0.0
    %243 = vmatprep.subr.mxu0 0.0
    %244 = vmatpush1.msra.mxu0 0.0
    %245 = vmatprep.subr.mxu0 0.0
    %246 = vmatpush1.msra.mxu0 0.0
    %247 = vmatprep.subr.mxu0 0.0
    %248 = vmatpush1.msra.mxu0 0.0
    %249 = vmatprep.subr.mxu0 0.0
    %250 = vmatpush1.msra.mxu0 0.0
    %251 = vmatprep.subr.mxu0 0.0
    %252 = vmatpush1.msra.mxu0 0.0
    %253 = vmatprep.subr.mxu0 0.0
    %254 = vmatpush1.msra.mxu0 0.0
    %255 = vmatprep.subr.mxu0 0.0
    %256 = vmatpush1.msra.mxu0 0.0
    %257 = vmatprep.subr.mxu0 0.0
    %258 = vmatpush1.msra.mxu0 0.0
    %259 = vmatprep.subr.mxu0 0.0
    %260 = vmatpush1.msra.mxu0 0.0
    %261 = vmatprep.subr.mxu0 0.0
    %262 = vmatpush1.msra.mxu0 0.0
    %263 = vmatprep.mubr.f32.mxu0 0.0
    %264 = vmatmul.mubr.f32.gmra.mrb[0].mxu0 %v194
    %v265 = vpop.f32.mrb[0].mxu0
    %v266 = vadd.f32 %v191, %v265
    %v267 = vpop.f32.mrb[0].mxu0
    %268 = vmatprep.mubr.f32.mxu0 0.0
    %269 = vmatmul.mubr.f32.gmra.mrb[0].mxu0 %v197
    %v270 = vpop.f32.mrb[0].mxu0
    %v271 = vadd.f32 %v191, %v270
    %v272 = vpop.f32.mrb[0].mxu0
    %273 = vdwg.mxu0
    %v274 = vld [vmem:[%s2] sm:$0x3]
    %v277 = vunpack.c.l.s4 1966171168
    %v278 = vunpack.c.0.s8 %v277
    %v279 = vlaneseq
    %v280 = vshrl.u32 %v279, 7
    %v281 = vsub.s32 %v278, %v280
    %v282 = vrot.slane %v274, %v281
    %v283 = vcombine.high %v282, %v282
    %v285 = vunpack.c.l.s4 1966171168
    %v286 = vunpack.c.0.s8 %v285
    %v287 = vlaneseq
    %v288 = vshrl.u32 %v287, 7
    %v289 = vsub.s32 %v286, %v288
    %v290 = vrot.slane %v282, %v289
    %v292 = vunpack.c.l.s4 1966171168
    %v293 = vunpack.c.0.s8 %v292
    %v294 = vlaneseq
    %v295 = vshrl.u32 %v294, 7
    %v296 = vsub.s32 %v293, %v295
    %v297 = vrot.slane %v283, %v296
    %v298 = vlaneseq
    %v299 = vshrl.u32 %v298, 7
    %v300 = vsub.s32 0, %v299
    %v301 = vrot.slane %v290, %v300
    %v302 = vlaneseq
    %v303 = vshrl.u32 %v302, 7
    %v304 = vsub.s32 0, %v303
    %v305 = vrot.slane %v297, %v304
    %v309 = vsel %vm100, %v174, 0
    %v312 = vsel %vm100, %v266, 0
    %314 = vmatprep.subr.mxu0 0.0
    %315 = vmatpush1.xpose.msra.mxu0 %v312
    %316 = vmatprep.subr.mxu0 0.0
    %317 = vmatpush1.xpose.msra.mxu0 0.0
    %318 = vmatprep.subr.mxu0 0.0
    %319 = vmatpush1.xpose.msra.mxu0 0.0
    %320 = vmatprep.subr.mxu0 0.0
    %321 = vmatpush1.xpose.msra.mxu0 0.0
    %322 = vmatprep.subr.mxu0 0.0
    %323 = vmatpush1.xpose.msra.mxu0 0.0
    %324 = vmatprep.subr.mxu0 0.0
    %325 = vmatpush1.xpose.msra.mxu0 0.0
    %326 = vmatprep.subr.mxu0 0.0
    %327 = vmatpush1.xpose.msra.mxu0 0.0
    %328 = vmatprep.subr.mxu0 0.0
    %329 = vmatpush1.xpose.msra.mxu0 0.0
    %330 = vmatprep.subr.mxu0 0.0
    %331 = vmatpush1.xpose.msra.mxu0 0.0
    %332 = vmatprep.subr.mxu0 0.0
    %333 = vmatpush1.xpose.msra.mxu0 0.0
    %334 = vmatprep.subr.mxu0 0.0
    %335 = vmatpush1.xpose.msra.mxu0 0.0
    %336 = vmatprep.subr.mxu0 0.0
    %337 = vmatpush1.xpose.msra.mxu0 0.0
    %338 = vmatprep.subr.mxu0 0.0
    %339 = vmatpush1.xpose.msra.mxu0 0.0
    %340 = vmatprep.subr.mxu0 0.0
    %341 = vmatpush1.xpose.msra.mxu0 0.0
    %342 = vmatprep.subr.mxu0 0.0
    %343 = vmatpush1.xpose.msra.mxu0 0.0
    %344 = vmatprep.subr.mxu0 0.0
    %345 = vmatpush1.xpose.msra.mxu0 0.0
    %346 = vmatprep.subr.mxu0 0.0
    %347 = vmatpush1.xpose.msra.mxu0 0.0
    %348 = vmatprep.subr.mxu0 0.0
    %349 = vmatpush1.xpose.msra.mxu0 0.0
    %350 = vmatprep.subr.mxu0 0.0
    %351 = vmatpush1.xpose.msra.mxu0 0.0
    %352 = vmatprep.subr.mxu0 0.0
    %353 = vmatpush1.xpose.msra.mxu0 0.0
    %354 = vmatprep.subr.mxu0 0.0
    %355 = vmatpush1.xpose.msra.mxu0 0.0
    %356 = vmatprep.subr.mxu0 0.0
    %357 = vmatpush1.xpose.msra.mxu0 0.0
    %358 = vmatprep.subr.mxu0 0.0
    %359 = vmatpush1.xpose.msra.mxu0 0.0
    %360 = vmatprep.subr.mxu0 0.0
    %361 = vmatpush1.xpose.msra.mxu0 0.0
    %362 = vmatprep.subr.mxu0 0.0
    %363 = vmatpush1.xpose.msra.mxu0 0.0
    %364 = vmatprep.subr.mxu0 0.0
    %365 = vmatpush1.xpose.msra.mxu0 0.0
    %366 = vmatprep.subr.mxu0 0.0
    %367 = vmatpush1.xpose.msra.mxu0 0.0
    %368 = vmatprep.subr.mxu0 0.0
    %369 = vmatpush1.xpose.msra.mxu0 0.0
    %370 = vmatprep.subr.mxu0 0.0
    %371 = vmatpush1.xpose.msra.mxu0 0.0
    %372 = vmatprep.subr.mxu0 0.0
    %373 = vmatpush1.xpose.msra.mxu0 0.0
    %374 = vmatprep.subr.mxu0 0.0
    %375 = vmatpush1.xpose.msra.mxu0 0.0
    %376 = vmatprep.subr.mxu0 0.0
    %377 = vmatpush1.xpose.msra.mxu0 0.0
    %378 = vmatprep.mubr.f32.mxu0 0.0
    %379 = vmatmul.mubr.f32.gmra.mrb[0].mxu0 %v309
    %v380 = vpop.f32.mrb[0].mxu0
    %v381 = vadd.f32 %v301, %v380
    %v382 = vpop.f32.mrb[0].mxu0
    %383 = vdwg.mxu0
    %v385 = vsel %vm100, %v179, 0
    %v388 = vsel %vm100, %v271, 0
    %390 = vmatprep.subr.mxu0 0.0
    %391 = vmatpush1.xpose.msra.mxu0 %v388
    %392 = vmatprep.subr.mxu0 0.0
    %393 = vmatpush1.xpose.msra.mxu0 0.0
    %394 = vmatprep.subr.mxu0 0.0
    %395 = vmatpush1.xpose.msra.mxu0 0.0
    %396 = vmatprep.subr.mxu0 0.0
    %397 = vmatpush1.xpose.msra.mxu0 0.0
    %398 = vmatprep.subr.mxu0 0.0
    %399 = vmatpush1.xpose.msra.mxu0 0.0
    %400 = vmatprep.subr.mxu0 0.0
    %401 = vmatpush1.xpose.msra.mxu0 0.0
    %402 = vmatprep.subr.mxu0 0.0
    %403 = vmatpush1.xpose.msra.mxu0 0.0
    %404 = vmatprep.subr.mxu0 0.0
    %405 = vmatpush1.xpose.msra.mxu0 0.0
    %406 = vmatprep.subr.mxu0 0.0
    %407 = vmatpush1.xpose.msra.mxu0 0.0
    %408 = vmatprep.subr.mxu0 0.0
    %409 = vmatpush1.xpose.msra.mxu0 0.0
    %410 = vmatprep.subr.mxu0 0.0
    %411 = vmatpush1.xpose.msra.mxu0 0.0
    %412 = vmatprep.subr.mxu0 0.0
    %413 = vmatpush1.xpose.msra.mxu0 0.0
    %414 = vmatprep.subr.mxu0 0.0
    %415 = vmatpush1.xpose.msra.mxu0 0.0
    %416 = vmatprep.subr.mxu0 0.0
    %417 = vmatpush1.xpose.msra.mxu0 0.0
    %418 = vmatprep.subr.mxu0 0.0
    %419 = vmatpush1.xpose.msra.mxu0 0.0
    %420 = vmatprep.subr.mxu0 0.0
    %421 = vmatpush1.xpose.msra.mxu0 0.0
    %422 = vmatprep.subr.mxu0 0.0
    %423 = vmatpush1.xpose.msra.mxu0 0.0
    %424 = vmatprep.subr.mxu0 0.0
    %425 = vmatpush1.xpose.msra.mxu0 0.0
    %426 = vmatprep.subr.mxu0 0.0
    %427 = vmatpush1.xpose.msra.mxu0 0.0
    %428 = vmatprep.subr.mxu0 0.0
    %429 = vmatpush1.xpose.msra.mxu0 0.0
    %430 = vmatprep.subr.mxu0 0.0
    %431 = vmatpush1.xpose.msra.mxu0 0.0
    %432 = vmatprep.subr.mxu0 0.0
    %433 = vmatpush1.xpose.msra.mxu0 0.0
    %434 = vmatprep.subr.mxu0 0.0
    %435 = vmatpush1.xpose.msra.mxu0 0.0
    %436 = vmatprep.subr.mxu0 0.0
    %437 = vmatpush1.xpose.msra.mxu0 0.0
    %438 = vmatprep.subr.mxu0 0.0
    %439 = vmatpush1.xpose.msra.mxu0 0.0
    %440 = vmatprep.subr.mxu0 0.0
    %441 = vmatpush1.xpose.msra.mxu0 0.0
    %442 = vmatprep.subr.mxu0 0.0
    %443 = vmatpush1.xpose.msra.mxu0 0.0
    %444 = vmatprep.subr.mxu0 0.0
    %445 = vmatpush1.xpose.msra.mxu0 0.0
    %446 = vmatprep.subr.mxu0 0.0
    %447 = vmatpush1.xpose.msra.mxu0 0.0
    %448 = vmatprep.subr.mxu0 0.0
    %449 = vmatpush1.xpose.msra.mxu0 0.0
    %450 = vmatprep.subr.mxu0 0.0
    %451 = vmatpush1.xpose.msra.mxu0 0.0
    %452 = vmatprep.subr.mxu0 0.0
    %453 = vmatpush1.xpose.msra.mxu0 0.0
    %454 = vmatprep.mubr.f32.mxu0 0.0
    %455 = vmatmul.mubr.f32.gmra.mrb[0].mxu0 %v385
    %v456 = vpop.f32.mrb[0].mxu0
    %v457 = vadd.f32 %v305, %v456
    %v458 = vpop.f32.mrb[0].mxu0
    %459 = vdwg.mxu0
    %vm460 = vcmask 64512
    %v461 = vsel %vm460, %v381, -inf
    %462 = vmax.xlane.f32.xlu0 %v461
    %v463 = vpop.xlane.xlu0 %462
    %v464 = vsel %vm460, %v457, -inf
    %465 = vmax.xlane.f32.xlu0 %v464
    %v466 = vpop.xlane.xlu0 %465
    %v467 = vsub.f32 %v381, %v463
    %v468 = vsub.f32 %v457, %v466
    %v469 = vmul.f32 %v467, 1.442695
    %v470 = vpow.pop %v469
    %v471 = vmul.f32 %v468, 1.442695
    %v472 = vpow.pop %v471
    %v473 = vsel %vm460, %v470, 0.0
    %474 = vadd.xlane.f32.xlu0 %v473
    %v475 = vpop.xlane.xlu0 %474
    %v476 = vsel %vm460, %v472, 0.0
    %477 = vadd.xlane.f32.xlu0 %v476
    %v478 = vpop.xlane.xlu0 %477
    %v479 = vrcp.pop %v475
    %v480 = vrcp.pop %v478
    %v481 = vmul.f32 %v470, %v479
    %v482 = vmul.f32 %v472, %v480
    %v483 = vld [vmem:[#allocation5] sm:$0xff]
    %v484 = vld [vmem:[#allocation5 + $0x8] sm:$0xff]
    %v486 = vsel %vm460, %v481, 0
    %488 = vmatprep.subr.mxu0 0.0
    %489 = vmatpush1.msra.mxu0 %v483
    %490 = vmatprep.subr.mxu0 0.0
    %491 = vmatpush1.msra.mxu0 0.0
    %492 = vmatprep.subr.mxu0 0.0
    %493 = vmatpush1.msra.mxu0 0.0
    %494 = vmatprep.subr.mxu0 0.0
    %495 = vmatpush1.msra.mxu0 0.0
    %496 = vmatprep.subr.mxu0 0.0
    %497 = vmatpush1.msra.mxu0 0.0
    %498 = vmatprep.subr.mxu0 0.0
    %499 = vmatpush1.msra.mxu0 0.0
    %500 = vmatprep.subr.mxu0 0.0
    %501 = vmatpush1.msra.mxu0 0.0
    %502 = vmatprep.subr.mxu0 0.0
    %503 = vmatpush1.msra.mxu0 0.0
    %504 = vmatprep.subr.mxu0 0.0
    %505 = vmatpush1.msra.mxu0 0.0
    %506 = vmatprep.subr.mxu0 0.0
    %507 = vmatpush1.msra.mxu0 0.0
    %508 = vmatprep.subr.mxu0 0.0
    %509 = vmatpush1.msra.mxu0 0.0
    %510 = vmatprep.subr.mxu0 0.0
    %511 = vmatpush1.msra.mxu0 0.0
    %512 = vmatprep.subr.mxu0 0.0
    %513 = vmatpush1.msra.mxu0 0.0
    %514 = vmatprep.subr.mxu0 0.0
    %515 = vmatpush1.msra.mxu0 0.0
    %516 = vmatprep.subr.mxu0 0.0
    %517 = vmatpush1.msra.mxu0 0.0
    %518 = vmatprep.subr.mxu0 0.0
    %519 = vmatpush1.msra.mxu0 0.0
    %520 = vmatprep.subr.mxu0 0.0
    %521 = vmatpush1.msra.mxu0 0.0
    %522 = vmatprep.subr.mxu0 0.0
    %523 = vmatpush1.msra.mxu0 0.0
    %524 = vmatprep.subr.mxu0 0.0
    %525 = vmatpush1.msra.mxu0 0.0
    %526 = vmatprep.subr.mxu0 0.0
    %527 = vmatpush1.msra.mxu0 0.0
    %528 = vmatprep.subr.mxu0 0.0
    %529 = vmatpush1.msra.mxu0 0.0
    %530 = vmatprep.subr.mxu0 0.0
    %531 = vmatpush1.msra.mxu0 0.0
    %532 = vmatprep.subr.mxu0 0.0
    %533 = vmatpush1.msra.mxu0 0.0
    %534 = vmatprep.subr.mxu0 0.0
    %535 = vmatpush1.msra.mxu0 0.0
    %536 = vmatprep.subr.mxu0 0.0
    %537 = vmatpush1.msra.mxu0 0.0
    %538 = vmatprep.subr.mxu0 0.0
    %539 = vmatpush1.msra.mxu0 0.0
    %540 = vmatprep.subr.mxu0 0.0
    %541 = vmatpush1.msra.mxu0 0.0
    %542 = vmatprep.subr.mxu0 0.0
    %543 = vmatpush1.msra.mxu0 0.0
    %544 = vmatprep.subr.mxu0 0.0
    %545 = vmatpush1.msra.mxu0 0.0
    %546 = vmatprep.subr.mxu0 0.0
    %547 = vmatpush1.msra.mxu0 0.0
    %548 = vmatprep.subr.mxu0 0.0
    %549 = vmatpush1.msra.mxu0 0.0
    %550 = vmatprep.subr.mxu0 0.0
    %551 = vmatpush1.msra.mxu0 0.0
    %552 = vmatprep.mubr.f32.mxu0 0.0
    %553 = vmatmul.mubr.f32.gmra.mrb[0].mxu0 %v486
    %v554 = vpop.f32.mrb[0].mxu0
    %v555 = vadd.f32 0.0, %v554
    %v556 = vpop.f32.mrb[0].mxu0
    %557 = vdwg.mxu0
    %v559 = vsel %vm460, %v482, 0
    %561 = vmatprep.subr.mxu0 0.0
    %562 = vmatpush1.msra.mxu0 %v484
    %563 = vmatprep.subr.mxu0 0.0
    %564 = vmatpush1.msra.mxu0 0.0
    %565 = vmatprep.subr.mxu0 0.0
    %566 = vmatpush1.msra.mxu0 0.0
    %567 = vmatprep.subr.mxu0 0.0
    %568 = vmatpush1.msra.mxu0 0.0
    %569 = vmatprep.subr.mxu0 0.0
    %570 = vmatpush1.msra.mxu0 0.0
    %571 = vmatprep.subr.mxu0 0.0
    %572 = vmatpush1.msra.mxu0 0.0
    %573 = vmatprep.subr.mxu0 0.0
    %574 = vmatpush1.msra.mxu0 0.0
    %575 = vmatprep.subr.mxu0 0.0
    %576 = vmatpush1.msra.mxu0 0.0
    %577 = vmatprep.subr.mxu0 0.0
    %578 = vmatpush1.msra.mxu0 0.0
    %579 = vmatprep.subr.mxu0 0.0
    %580 = vmatpush1.msra.mxu0 0.0
    %581 = vmatprep.subr.mxu0 0.0
    %582 = vmatpush1.msra.mxu0 0.0
    %583 = vmatprep.subr.mxu0 0.0
    %584 = vmatpush1.msra.mxu0 0.0
    %585 = vmatprep.subr.mxu0 0.0
    %586 = vmatpush1.msra.mxu0 0.0
    %587 = vmatprep.subr.mxu0 0.0
    %588 = vmatpush1.msra.mxu0 0.0
    %589 = vmatprep.subr.mxu0 0.0
    %590 = vmatpush1.msra.mxu0 0.0
    %591 = vmatprep.subr.mxu0 0.0
    %592 = vmatpush1.msra.mxu0 0.0
    %593 = vmatprep.subr.mxu0 0.0
    %594 = vmatpush1.msra.mxu0 0.0
    %595 = vmatprep.subr.mxu0 0.0
    %596 = vmatpush1.msra.mxu0 0.0
    %597 = vmatprep.subr.mxu0 0.0
    %598 = vmatpush1.msra.mxu0 0.0
    %599 = vmatprep.subr.mxu0 0.0
    %600 = vmatpush1.msra.mxu0 0.0
    %601 = vmatprep.subr.mxu0 0.0
    %602 = vmatpush1.msra.mxu0 0.0
    %603 = vmatprep.subr.mxu0 0.0
    %604 = vmatpush1.msra.mxu0 0.0
    %605 = vmatprep.subr.mxu0 0.0
    %606 = vmatpush1.msra.mxu0 0.0
    %607 = vmatprep.subr.mxu0 0.0
    %608 = vmatpush1.msra.mxu0 0.0
    %609 = vmatprep.subr.mxu0 0.0
    %610 = vmatpush1.msra.mxu0 0.0
    %611 = vmatprep.subr.mxu0 0.0
    %612 = vmatpush1.msra.mxu0 0.0
    %613 = vmatprep.subr.mxu0 0.0
    %614 = vmatpush1.msra.mxu0 0.0
    %615 = vmatprep.subr.mxu0 0.0
    %616 = vmatpush1.msra.mxu0 0.0
    %617 = vmatprep.subr.mxu0 0.0
    %618 = vmatpush1.msra.mxu0 0.0
    %619 = vmatprep.subr.mxu0 0.0
    %620 = vmatpush1.msra.mxu0 0.0
    %621 = vmatprep.subr.mxu0 0.0
    %622 = vmatpush1.msra.mxu0 0.0
    %623 = vmatprep.subr.mxu0 0.0
    %624 = vmatpush1.msra.mxu0 0.0
    %625 = vmatprep.mubr.f32.mxu0 0.0
    %626 = vmatmul.mubr.f32.gmra.mrb[0].mxu0 %v559
    %v627 = vpop.f32.mrb[0].mxu0
    %v628 = vadd.f32 0.0, %v627
    %v629 = vpop.f32.mrb[0].mxu0
    %630 = vdwg.mxu0
    %631 = vst.msk [vmem:[#allocation10] sm:$0xff] %vm100, %v555
    %632 = vst.msk [vmem:[#allocation10 + $0x8] sm:$0xff] %vm100, %v628
    %633 = vrot.lane.b32.xlu0 %v174, 32
    %v634 = vpop.permute.xlu0 %633
    %635 = vrot.lane.b32.xlu0 %v179, 32
    %v636 = vpop.permute.xlu0 %635
    %vm639 = vcmask 523520
    %640 = vst.msk [vmem:[#allocation10] sm:$0xff] %vm639, %v634
    %641 = vst.msk [vmem:[#allocation10 + $0x8] sm:$0xff] %vm639, %v636
    %642 = vst.msk [vmem:[#allocation11] sm:$0xff] %vm460, %v381
    %643 = vst.msk [vmem:[#allocation11 + $0x8] sm:$0xff] %vm460, %v457
    // Predicated region
    $region46: #{tpu_custom_call.1} parent=1 // pred_check
      _
    $region47: #{tpu_custom_call.1} parent=1 // pred_check_branch
      %645 = sbr.rel (0) target = $region49
    $region48: #{tpu_custom_call.1} parent=1 // pred_region
      %s647 = ssub.s32 256, 256
      %648 = vsyncadd [#allocation4], %s647
      %s649 = sshll.u32 [#allocation10], 4
      %s650 = int_to_ptr.vmem [resolvable:$true] %s649
      %655 = dma.vmem_to_hbm [thread:$0]  %s650, 256, %s7, [#allocation4], 128, 128, 8
    $region49: #{tpu_custom_call.1} parent=1 // pred_fallthru
      _
    // Predicated region
    $region50: #{tpu_custom_call.1} parent=1 // pred_check
      _
    $region51: #{tpu_custom_call.1} parent=1 // pred_check_branch
      %657 = sbr.rel (0) target = $region53
    $region52: #{tpu_custom_call.1} parent=1 // pred_region
      %s659 = ssub.s32 256, 256
      %660 = vsyncadd [#allocation12], %s659
      %s661 = sshll.u32 [#allocation11], 4
      %s662 = int_to_ptr.vmem [resolvable:$true] %s661
      %667 = dma.vmem_to_hbm [thread:$0]  %s662, 256, %s8, [#allocation12], 128, 128, 8
    $region53: #{tpu_custom_call.1} parent=1 // pred_fallthru
      _
    // Predicated region
    $region54: #{tpu_custom_call.1} parent=1 // pred_check
      _
    $region55: #{tpu_custom_call.1} parent=1 // pred_check_branch
      %669 = sbr.rel (0) target = $region57
    $region56: #{tpu_custom_call.1} parent=1 // pred_region
      %670 = dma.done [#allocation4], 256
    $region57: #{tpu_custom_call.1} parent=1 // pred_fallthru
      _
    // Predicated region
    $region58: #{tpu_custom_call.1} parent=1 // pred_check
      _
    $region59: #{tpu_custom_call.1} parent=1 // pred_check_branch
      %672 = sbr.rel (0) target = $region61
    $region60: #{tpu_custom_call.1} parent=1 // pred_region
      %673 = dma.done [#allocation12], 256
    $region61: #{tpu_custom_call.1} parent=1 // pred_fallthru
      _
    %674 = vsyncpa [#allocation3], 1
    %675 = vsyncpa [#allocation6], 1
    %676 = vsyncpa [#allocation9], 1
    %677 = vsyncpa [#allocation4], 1
    %678 = vsyncpa [#allocation12], 1

</llo_original>
